<compile_context>
chip_gen: v7x
topology: tpu7x:2x2x1
jax: 0.10.0
libtpu: 0.0.40
codegen_flags: <defaults>
</compile_context>

<pallas_src>
import numpy as np
import jax
import jax.numpy as jnp
from jax.experimental import pallas as pl
from jax.experimental.pallas import tpu as pltpu


def _round_up(x, m):
    return ((x + m - 1) // m) * m


def _pick_row_tile(R, max_tile=512, grain=16):
    """Largest row tile (multiple of `grain`) with <=10% padding waste; small
    problems split into two tiles so both v7x TensorCores get work."""
    Rg = _round_up(R, grain)
    if Rg <= max_tile:
        half = Rg // 2
        if Rg >= 2 * grain and half % grain == 0:
            return half
        return Rg
    best_tile, best_pad = max_tile, _round_up(R, max_tile) - R
    tile = max_tile
    while tile >= 2 * grain:
        pad = _round_up(R, tile) - R
        if pad * 10 <= R:
            return tile
        if pad < best_pad:
            best_tile, best_pad = tile, pad
        tile -= grain
    return best_tile


# ---------------------------------------------------------------------------
# Kernel 1: emissions = seq_out @ W_fc^T + b_fc ; probs = softmax(emissions)
#           (label dim padded to 128 lanes; bf16 matmul, f32 accumulate)
# ---------------------------------------------------------------------------
def _emission_kernel(x_ref, w_ref, b_ref, em_ref, probs_ref):
    em = jnp.dot(x_ref[...], w_ref[...],
                 preferred_element_type=jnp.float32) + b_ref[...]
    em_ref[...] = em
    m = jnp.max(em, axis=-1, keepdims=True)
    e = jnp.exp(em - m)
    s = jnp.sum(e, axis=-1, keepdims=True)
    probs_ref[...] = e * pl.reciprocal(s, approx=True)


def emissions_and_probs(seq_out, w_fc, b_fc):
    """fc + softmax over all B*S rows, row-tiled with a parallel grid."""
    B, S, H = seq_out.shape
    T = w_fc.shape[0]
    Tp = max(128, _round_up(T, 128))          # lane-dense output width
    R = B * S

    x = seq_out.reshape(R, H).astype(jnp.bfloat16)
    row_tile = _pick_row_tile(R)
    Rp = _round_up(R, row_tile)
    if Rp != R:
        x = jnp.pad(x, ((0, Rp - R), (0, 0)))

    # Zero-padded weight columns; -1e30 bias on the pad so softmax ignores it.
    w_t = jnp.zeros((H, Tp), jnp.bfloat16)
    w_t = w_t.at[:, :T].set(jnp.asarray(w_fc, jnp.float32).T.astype(jnp.bfloat16))
    b2 = jnp.full((1, Tp), -1e30, jnp.float32)
    b2 = b2.at[0, :T].set(jnp.asarray(b_fc, jnp.float32))

    em, probs = pl.pallas_call(
        _emission_kernel,
        out_shape=(jax.ShapeDtypeStruct((Rp, Tp), jnp.float32),
                   jax.ShapeDtypeStruct((Rp, Tp), jnp.float32)),
        grid=(Rp // row_tile,),
        in_specs=[pl.BlockSpec((row_tile, H), lambda i: (i, 0)),
                  pl.BlockSpec((H, Tp), lambda i: (0, 0)),
                  pl.BlockSpec((1, Tp), lambda i: (0, 0))],
        out_specs=(pl.BlockSpec((row_tile, Tp), lambda i: (i, 0)),
                   pl.BlockSpec((row_tile, Tp), lambda i: (i, 0))),
        compiler_params=pltpu.CompilerParams(dimension_semantics=("parallel",)),
    )(x, w_t, b2)

    em = em[:R, :T].reshape(B, S, T)
    probs = probs[:R, :T].reshape(B, S, T)
    return em, probs


# ---------------------------------------------------------------------------
# Kernel 2: CRF Viterbi decode (unmasked, as in self.crf.decode(emissions))
#           + per-example CRF log-likelihood (mask-gated, torchcrf semantics).
#           Batch lives on the LANE dimension: emissions / one-hot labels are
#           [S, T, B], per-step state is [T, B].
# ---------------------------------------------------------------------------
def _crf_kernel(em_ref, mask_ref, lab_ref, ohlast_ref, trans_ref, start_ref,
                end_ref, tags_ref, llh_ref, hist_ref):
    S, T, Bt = em_ref.shape
    trans = trans_ref[...]                     # [Tp, Tc]
    start = start_ref[...]                     # [T, 1]
    end = end_ref[...]                         # [T, 1]

    # loop-invariant values hoisted out of the recursion
    prev_iota = jax.lax.broadcasted_iota(jnp.int32, (T, T, Bt), 0)   # prev-tag ids
    t_iota = jax.lax.broadcasted_iota(jnp.int32, (T, Bt), 0)
    trans_b = jnp.broadcast_to(trans[:, :, None], (T, T, Bt))        # [Tp, Tc, Bt]

    em0 = em_ref[0]                            # [T, Bt]
    oh0 = lab_ref[0]                           # [T, Bt]
    score0 = start + em0                       # Viterbi scores
    alpha0 = score0                            # forward (logsumexp) scores
    num0 = jnp.sum(score0 * oh0, axis=0, keepdims=True)              # [1, Bt]

    unroll = True if S <= 64 else 8

    # ---- single fused recursion over sequence positions 1..S-1 ----
    def body(i, carry):
        score, alpha, num, prev_oh = carry
        em_i = em_ref[i]                       # [Tc, Bt]
        oh_i = lab_ref[i]                      # [Tc, Bt]
        m_i = mask_ref[i]                      # [1, Bt]

        te = trans_b + em_i[None, :, :]        # [Tp, Tc, Bt]

        # Viterbi (decode ignores the mask, matching crf.decode(emissions))
        ns_v = score[:, None, :] + te
        best = jnp.max(ns_v, axis=0)                                  # [Tc, Bt]
        arg = jnp.min(jnp.where(ns_v >= best[None, :, :], prev_iota, T), axis=0)
        hist_ref[i] = arg                                             # [T, Bt] store

        # gold-path numerator: trans[prev, cur] via tiny MXU matmul
        tr_prev = jax.lax.dot_general(trans, prev_oh, (((0,), (0,)), ((), ())),
                                      preferred_element_type=jnp.float32)  # [Tc, Bt]
        gold = jnp.sum((tr_prev + em_i) * oh_i, axis=0, keepdims=True)      # [1, Bt]
        num = num + m_i * gold

        # forward algorithm (partition function), mask-gated
        ns_f = alpha[:, None, :] + te
        mx = jnp.max(ns_f, axis=0)
        new_alpha = mx + jnp.log(jnp.sum(jnp.exp(ns_f - mx[None, :, :]), axis=0))
        alpha = jnp.where(m_i > 0.0, new_alpha, alpha)

        return best, alpha, num, oh_i

    score, alpha, num, _ = jax.lax.fori_loop(
        1, S, body, (score0, alpha0, num0, oh0), unroll=unroll)

    # ---- decode: terminate + backtrack with per-step dynamic stores ----
    score = score + end
    maxv = jnp.max(score, axis=0, keepdims=True)                      # [1, Bt]
    cur = jnp.min(jnp.where(score >= maxv, t_iota, T), axis=0, keepdims=True)
    tags_ref[S - 1] = cur

    def back_body(j, cur):
        i = (S - 1) - j
        hist_i = hist_ref[i]                                          # [T, Bt]
        prev = jnp.sum(jnp.where(t_iota == cur, hist_i, 0),
                       axis=0, keepdims=True)                         # [1, Bt]
        tags_ref[i - 1] = prev
        return prev

    jax.lax.fori_loop(0, S - 1, back_body, cur, unroll=unroll)

    # ---- per-example log-likelihood (mean / negation done outside) ----
    num = num + jnp.sum(end * ohlast_ref[...], axis=0, keepdims=True)
    alpha = alpha + end
    amx = jnp.max(alpha, axis=0, keepdims=True)
    denom = amx + jnp.log(jnp.sum(jnp.exp(alpha - amx), axis=0, keepdims=True))
    llh_ref[...] = num - denom


def crf_decode_and_loss(emissions, attention_mask, labels, transitions,
                        start_trans, end_trans):
    B, S, T = emissions.shape
    mask = attention_mask.astype(jnp.float32)               # [B, S]
    labels = labels.astype(jnp.int32)

    # One-hot encodings in plain JAX (cheap); then batch-on-lanes layouts.
    lab_oh = jax.nn.one_hot(labels, T, dtype=jnp.float32)               # [B, S, T]
    seq_ends = jnp.sum(mask, axis=1).astype(jnp.int32) - 1              # [B]
    last_lab = jnp.take_along_axis(labels, seq_ends[:, None], axis=1)[:, 0]
    oh_last = jax.nn.one_hot(last_lab, T, dtype=jnp.float32)            # [B, T]

    em_stb = jnp.transpose(emissions.astype(jnp.float32), (1, 2, 0))    # [S, T, B]
    lab_stb = jnp.transpose(lab_oh, (1, 2, 0))                          # [S, T, B]
    mask_s1b = jnp.transpose(mask, (1, 0))[:, None, :]                  # [S, 1, B]
    ohlast_tb = jnp.transpose(oh_last, (1, 0))                          # [T, B]

    # Batch on lanes: full B if it fits, otherwise 128-wide tiles.
    if B <= 128:
        b_tile, Bp = B, B
    else:
        b_tile = 128
        Bp = _round_up(B, b_tile)
    if Bp != B:
        pad = Bp - B
        em_stb = jnp.pad(em_stb, ((0, 0), (0, 0), (0, pad)))
        lab_stb = jnp.pad(lab_stb, ((0, 0), (0, 0), (0, pad)))
        mask_s1b = jnp.pad(mask_s1b, ((0, 0), (0, 0), (0, pad)))
        ohlast_tb = jnp.pad(ohlast_tb, ((0, 0), (0, pad)))

    trans = jnp.asarray(transitions, jnp.float32)                       # [T, T]
    start_c = jnp.asarray(start_trans, jnp.float32).reshape(T, 1)
    end_c = jnp.asarray(end_trans, jnp.float32).reshape(T, 1)

    tags_p, llh_p = pl.pallas_call(
        _crf_kernel,
        out_shape=(jax.ShapeDtypeStruct((S, 1, Bp), jnp.int32),
                   jax.ShapeDtypeStruct((1, Bp), jnp.float32)),
        grid=(Bp // b_tile,),
        in_specs=[pl.BlockSpec((S, T, b_tile), lambda b: (0, 0, b)),    # emissions
                  pl.BlockSpec((S, 1, b_tile), lambda b: (0, 0, b)),    # mask
                  pl.BlockSpec((S, T, b_tile), lambda b: (0, 0, b)),    # label 1-hot
                  pl.BlockSpec((T, b_tile), lambda b: (0, b)),          # last-label 1-hot
                  pl.BlockSpec((T, T), lambda b: (0, 0)),
                  pl.BlockSpec((T, 1), lambda b: (0, 0)),
                  pl.BlockSpec((T, 1), lambda b: (0, 0))],
        out_specs=(pl.BlockSpec((S, 1, b_tile), lambda b: (0, 0, b)),
                   pl.BlockSpec((1, b_tile), lambda b: (0, b))),
        scratch_shapes=[pltpu.VMEM((S, T, b_tile), jnp.int32)],         # backpointers
        compiler_params=pltpu.CompilerParams(dimension_semantics=("parallel",)),
    )(em_stb, mask_s1b, lab_stb, ohlast_tb, trans, start_c, end_c)

    tags = jnp.transpose(tags_p[:, 0, :B], (1, 0))        # [B, S]
    llh = llh_p[0, :B]
    loss = -jnp.mean(llh)     # torchcrf reduction='mean' -> llh.mean(); loss = -that
    return tags, loss


# ---------------------------------------------------------------------------
# Full forward (mirrors UnimoCRFModel.forward returning (loss, logits, probs))
# ---------------------------------------------------------------------------
def unimo_crf_forward(params, input_ids, attention_mask, labels, images=None,
                      aux_imgs=None, rcnn_imgs=None):
    # TODO(synk): UnimoModel (pretrained CLIP+BERT multimodal fusion encoder) is
    # replaced by a deterministic embedding-lookup encoder; images/aux/rcnn unused.
    sequence_output = jnp.take(params["emb"], input_ids, axis=0)   # [B, S, H]
    # nn.Dropout(0.1): inference-mode identity (deterministic kernel).
    emissions, probs = emissions_and_probs(sequence_output, params["w_fc"],
                                           params["b_fc"])
    logits, loss = crf_decode_and_loss(
        emissions, attention_mask, labels,
        params["transitions"], params["start_transitions"],
        params["end_transitions"])
    return loss, logits, probs, emissions


# ---------------------------------------------------------------------------
# Pure numpy reference for the CRF (torchcrf semantics) — used for self-check.
# ---------------------------------------------------------------------------
def _ref_crf(em, mask, labels, trans, start, end):
    em = np.asarray(em, np.float32)
    mask = np.asarray(mask, np.float32)
    labels = np.asarray(labels)
    trans = np.asarray(trans, np.float32)
    start = np.asarray(start, np.float32)
    end = np.asarray(end, np.float32)
    B, S, T = em.shape
    bidx = np.arange(B)
    # decode (no mask)
    score = start[None, :] + em[:, 0]
    history = []
    for i in range(1, S):
        ns = score[:, :, None] + trans[None] + em[:, i][:, None, :]
        history.append(ns.argmax(axis=1))
        score = ns.max(axis=1)
    score = score + end[None, :]
    cur = score.argmax(axis=1)
    tags = np.zeros((B, S), np.int32)
    tags[:, S - 1] = cur
    for i in range(S - 1, 0, -1):
        cur = history[i - 1][bidx, cur]
        tags[:, i - 1] = cur
    # numerator
    num = start[labels[:, 0]] + em[bidx, 0, labels[:, 0]]
    for i in range(1, S):
        num = num + trans[labels[:, i - 1], labels[:, i]] * mask[:, i]
        num = num + em[bidx, i, labels[:, i]] * mask[:, i]
    seq_ends = mask.sum(axis=1).astype(np.int32) - 1
    num = num + end[labels[bidx, seq_ends]]
    # denominator
    alpha = start[None, :] + em[:, 0]
    for i in range(1, S):
        ns = alpha[:, :, None] + trans[None] + em[:, i][:, None, :]
        mx = ns.max(axis=1)
        new = mx + np.log(np.exp(ns - mx[:, None, :]).sum(axis=1))
        alpha = np.where(mask[:, i:i + 1] > 0, new, alpha)
    alpha = alpha + end[None, :]
    amx = alpha.max(axis=1)
    denom = amx + np.log(np.exp(alpha - amx[:, None]).sum(axis=1))
    llh = num - denom
    return tags, np.float32(-(llh.mean()))


if __name__ == "__main__":
    B, S, H, T, V = 2, 8, 32, 8, 50   # batch, seq, hidden, num_labels, vocab
    key = jax.random.PRNGKey(0)
    k_emb, k_w, k_tr, k_st, k_en, k_ids, k_lab = jax.random.split(key, 7)

    params = {
        "emb": jax.random.normal(k_emb, (V, H), jnp.float32) * 0.5,
        "w_fc": jax.random.normal(k_w, (T, H), jnp.float32) * 0.2,
        "b_fc": jnp.zeros((T,), jnp.float32),
        "transitions": jax.random.uniform(k_tr, (T, T), jnp.float32, -0.1, 0.1),
        "start_transitions": jax.random.uniform(k_st, (T,), jnp.float32, -0.1, 0.1),
        "end_transitions": jax.random.uniform(k_en, (T,), jnp.float32, -0.1, 0.1),
    }

    input_ids = jax.random.randint(k_ids, (B, S), 0, V, dtype=jnp.int32)
    labels = jax.random.randint(k_lab, (B, S), 0, T, dtype=jnp.int32)
    lengths = jnp.array([S, S - 2], jnp.int32)
    attention_mask = (jnp.arange(S)[None, :] < lengths[:, None]).astype(jnp.int32)
    images = jnp.zeros((B, 3, 16, 16), jnp.float32)   # placeholder pixel_values

    loss, logits, probs, emissions = unimo_crf_forward(
        params, input_ids, attention_mask, labels, images=images)
    jax.block_until_ready((loss, logits, probs, emissions))

    # ---- self check against plain JAX / numpy references ----
    seq_out = jnp.take(params["emb"], input_ids, axis=0)
    x_bf = seq_out.reshape(B * S, H).astype(jnp.bfloat16)
    w_bf = params["w_fc"].astype(jnp.bfloat16)
    em_ref = (jnp.dot(x_bf, w_bf.T, preferred_element_type=jnp.float32)
              + params["b_fc"][None, :]).reshape(B, S, T)
    probs_ref = jax.nn.softmax(em_ref, axis=-1)
    np.testing.assert_allclose(np.asarray(emissions), np.asarray(em_ref),
                               rtol=2e-3, atol=2e-3)
    np.testing.assert_allclose(np.asarray(probs), np.asarray(probs_ref),
                               rtol=3e-3, atol=3e-3)

    tags_ref, loss_ref = _ref_crf(emissions, attention_mask, labels,
                                  params["transitions"],
                                  params["start_transitions"],
                                  params["end_transitions"])
    assert np.array_equal(np.asarray(logits), tags_ref), "CRF decode mismatch"
    np.testing.assert_allclose(float(loss), float(loss_ref), rtol=1e-3, atol=1e-3)

    print("KERNEL_OK")
</pallas_src>

<mosaic_0001>
module attributes {stable_mosaic.version = 11 : i64} {
  func.func @_emission_kernel(%arg0: i32, %arg1: memref<16x32xbf16, #tpu.memory_space<vmem>>, %arg2: memref<32x128xbf16, #tpu.memory_space<vmem>>, %arg3: memref<1x128xf32, #tpu.memory_space<vmem>>, %arg4: memref<16x128xf32, #tpu.memory_space<vmem>>, %arg5: memref<16x128xf32, #tpu.memory_space<vmem>>) attributes {dimension_semantics = [#tpu.dimension_semantics<parallel>], iteration_bounds = array<i64: 1>, scalar_prefetch = 0 : i64, scratch_operands = 0 : i64, tpu.core_type = #tpu.core_type<tc>, window_params = [{transform_indices = @transform_0, window_bounds = array<i64: 16, 32>}, {pipeline_mode = #tpu.pipeline_mode<synchronous>, transform_indices = @transform_1, window_bounds = array<i64: 32, 128>}, {pipeline_mode = #tpu.pipeline_mode<synchronous>, transform_indices = @transform_2, window_bounds = array<i64: 1, 128>}, {transform_indices = @transform_3, window_bounds = array<i64: 16, 128>}, {transform_indices = @transform_4, window_bounds = array<i64: 16, 128>}]} {
    %c0 = arith.constant 0 : index
    %c0_0 = arith.constant 0 : index
    %0 = vector.load %arg1[%c0, %c0_0] : memref<16x32xbf16, #tpu.memory_space<vmem>>, vector<16x32xbf16>
    %c0_1 = arith.constant 0 : index
    %c0_2 = arith.constant 0 : index
    %1 = vector.load %arg2[%c0_1, %c0_2] : memref<32x128xbf16, #tpu.memory_space<vmem>>, vector<32x128xbf16>
    %cst = arith.constant dense<0.000000e+00> : vector<16x128xf32>
    %2 = tpu.matmul %0, %1, %cst {dimension_numbers = #tpu.dot_dimension_numbers<[1], [0], [0], [1], [0, 0, 1, 1], [], []>} : vector<16x32xbf16>, vector<32x128xbf16>, vector<16x128xf32> -> vector<16x128xf32>
    %c0_3 = arith.constant 0 : index
    %c0_4 = arith.constant 0 : index
    %3 = vector.load %arg3[%c0_3, %c0_4] : memref<1x128xf32, #tpu.memory_space<vmem>>, vector<1x128xf32>
    %4 = vector.broadcast %3 : vector<1x128xf32> to vector<16x128xf32>
    %5 = arith.addf %2, %4 : vector<16x128xf32>
    %c0_5 = arith.constant 0 : index
    %c0_6 = arith.constant 0 : index
    %6 = vector.load %arg4[%c0_5, %c0_6] : memref<16x128xf32, #tpu.memory_space<vmem>>, vector<16x128xf32>
    tpu.vector_store %arg4[%c0_5, %c0_6], %5 {strides = array<i32>} : memref<16x128xf32, #tpu.memory_space<vmem>>, vector<16x128xf32>,
    %cst_7 = arith.constant dense<0xFF800000> : vector<16xf32>
    %7 = vector.multi_reduction <maximumf>, %5, %cst_7 [1] : vector<16x128xf32> to vector<16xf32>
    %8 = vector.shape_cast %7 : vector<16xf32> to vector<16x1xf32>
    %9 = vector.broadcast %8 : vector<16x1xf32> to vector<16x128xf32>
    %10 = arith.subf %5, %9 : vector<16x128xf32>
    %11 = math.exp %10 : vector<16x128xf32>
    %cst_8 = arith.constant dense<0.000000e+00> : vector<16xf32>
    %12 = vector.multi_reduction <add>, %11, %cst_8 [1] : vector<16x128xf32> to vector<16xf32>
    %13 = vector.shape_cast %12 : vector<16xf32> to vector<16x1xf32>
    %14 = tpu.reciprocal %13 {approx = true} : vector<16x1xf32> -> vector<16x1xf32>
    %15 = vector.broadcast %14 : vector<16x1xf32> to vector<16x128xf32>
    %16 = arith.mulf %11, %15 : vector<16x128xf32>
    %c0_9 = arith.constant 0 : index
    %c0_10 = arith.constant 0 : index
    %17 = vector.load %arg5[%c0_9, %c0_10] : memref<16x128xf32, #tpu.memory_space<vmem>>, vector<16x128xf32>
    tpu.vector_store %arg5[%c0_9, %c0_10], %16 {strides = array<i32>} : memref<16x128xf32, #tpu.memory_space<vmem>>, vector<16x128xf32>,
    return
  }
  func.func @transform_0(%arg0: i32) -> (i32, i32) {
    %c0_i32 = arith.constant 0 : i32
    %c0_i32_0 = arith.constant 0 : i32
    return %arg0, %c0_i32 : i32, i32
  }
  func.func @transform_1(%arg0: i32) -> (i32, i32) {
    %c0_i32 = arith.constant 0 : i32
    %c0_i32_0 = arith.constant 0 : i32
    %c0_i32_1 = arith.constant 0 : i32
    return %c0_i32, %c0_i32_0 : i32, i32
  }
  func.func @transform_2(%arg0: i32) -> (i32, i32) {
    %c0_i32 = arith.constant 0 : i32
    %c0_i32_0 = arith.constant 0 : i32
    %c0_i32_1 = arith.constant 0 : i32
    return %c0_i32, %c0_i32_0 : i32, i32
  }
  func.func @transform_3(%arg0: i32) -> (i32, i32) {
    %c0_i32 = arith.constant 0 : i32
    %c0_i32_0 = arith.constant 0 : i32
    return %arg0, %c0_i32 : i32, i32
  }
  func.func @transform_4(%arg0: i32) -> (i32, i32) {
    %c0_i32 = arith.constant 0 : i32
    %c0_i32_0 = arith.constant 0 : i32
    return %arg0, %c0_i32 : i32, i32
  }
}

</mosaic_0001>

<llo_original>
// kernel: tpu_custom_call.1
$region0: #{tpu_custom_call.1}
  #allocation0 [shape = 'u32[]', space=smem, size = 0x4, offset = 0x4, fixed_abs, tag = 'smem constant byte address 0x4 - core index']
  #allocation1 [shape = 'u32[144,128]{1,0:T(1,128)}', space=vmem, size = 0x12000, scoped, tag = 'internal scratch']
  %s0 = inlined_call_operand.hbm [shape: bf16[16,32], index: 0, kind: input, shape index: {}]
  %s1 = inlined_call_operand.hbm [shape: bf16[32,128], index: 1, kind: input, shape index: {}]
  %s2 = inlined_call_operand.vmem [shape: f32[1,128], index: 2, kind: input, shape index: {}]
  %s3 = inlined_call_operand.hbm [shape: f32[16,128], index: 3, kind: output, shape index: {0}]
  %s4 = inlined_call_operand.hbm [shape: f32[16,128], index: 4, kind: output, shape index: {1}]
  %5 = xla_tuple %s3, %s4
  %s6 = sld [smem:[#allocation0]]
  $region38: #{tpu_custom_call.1} parent=0
    _
  %s8 = ssub.s32 1, %s6
  %s9 = scalar_select 0, %s8, %s6
  $region1: #{tpu_custom_call.1} parent=0
    #allocation2 [shape = 'u8[4096]{0}', space=vmem, size = 0x1000, scoped, tag = 'input window, operand 0, single buffered']
    #allocation3 [shape = 's32[1]{0}', space=sflag, size = 0x4, scoped, tag = 'scoped memory for tpu_custom_call.1']
    #allocation4 [shape = 's32[1]{0}', space=sflag, size = 0x4, scoped, tag = 'scoped memory for tpu_custom_call.1']
    #allocation5 [shape = 'u8[8192]{0}', space=vmem, size = 0x2000, scoped, tag = 'input window, operand 1, single buffered']
    #allocation6 [shape = 's32[1]{0}', space=sflag, size = 0x4, scoped, tag = 'scoped memory for tpu_custom_call.1']
    #allocation7 [shape = 'u8[8192]{0}', space=vmem, size = 0x2000, scoped, tag = 'output window, operand 0, single buffered']
    #allocation8 [shape = 'u8[8192]{0}', space=vmem, size = 0x2000, scoped, tag = 'output window, operand 1, single buffered']
    #allocation9 [shape = 's32[1]{0}', space=sflag, size = 0x4, scoped, tag = 'scoped memory for tpu_custom_call.1']
    %10 = vsyncpa [#allocation3], 0
    %11 = vsyncpa [#allocation6], 0
    %12 = vsyncpa [#allocation4], 0
    %13 = vsyncpa [#allocation9], 0
    // Predicated region
    $region2: #{tpu_custom_call.1} parent=1 // pred_check
      _
    $region3: #{tpu_custom_call.1} parent=1 // pred_check_branch
      %15 = sbr.rel (0) target = $region5
    $region4: #{tpu_custom_call.1} parent=1 // pred_region
      %s17 = ssub.s32 128, 128
      %18 = vsyncadd [#allocation3], %s17
      %s19 = sshll.u32 [#allocation2], 4
      %s20 = int_to_ptr.vmem [resolvable:$true] %s19
      %25 = dma.hbm_to_vmem [thread:$0]  %s0, 128, %s20, [#allocation3], 64, 64, 4
    $region5: #{tpu_custom_call.1} parent=1 // pred_fallthru
      _
    // Predicated region
    $region6: #{tpu_custom_call.1} parent=1 // pred_check
      _
    $region7: #{tpu_custom_call.1} parent=1 // pred_check_branch
      %27 = sbr.rel (0) target = $region9
    $region8: #{tpu_custom_call.1} parent=1 // pred_region
      %s29 = ssub.s32 256, 256
      %30 = vsyncadd [#allocation6], %s29
      %s31 = sshll.u32 [#allocation5], 4
      %s32 = int_to_ptr.vmem [resolvable:$true] %s31
      %37 = dma.hbm_to_vmem [thread:$0]  %s1, 256, %s32, [#allocation6], 64, 64, 4
    $region9: #{tpu_custom_call.1} parent=1 // pred_fallthru
      _
    // Predicated region
    $region10: #{tpu_custom_call.1} parent=1 // pred_check
      _
    $region11: #{tpu_custom_call.1} parent=1 // pred_check_branch
      %39 = sbr.rel (0) target = $region13
    $region12: #{tpu_custom_call.1} parent=1 // pred_region
      _
    $region13: #{tpu_custom_call.1} parent=1 // pred_fallthru
      _
    // Predicated region
    $region14: #{tpu_custom_call.1} parent=1 // pred_check
      _
    $region15: #{tpu_custom_call.1} parent=1 // pred_check_branch
      %41 = sbr.rel (0) target = $region17
    $region16: #{tpu_custom_call.1} parent=1 // pred_region
      %42 = dma.done [#allocation3], 128
    $region17: #{tpu_custom_call.1} parent=1 // pred_fallthru
      _
    // Predicated region
    $region18: #{tpu_custom_call.1} parent=1 // pred_check
      _
    $region19: #{tpu_custom_call.1} parent=1 // pred_check_branch
      %44 = sbr.rel (0) target = $region21
    $region20: #{tpu_custom_call.1} parent=1 // pred_region
      %45 = dma.done [#allocation6], 256
    $region21: #{tpu_custom_call.1} parent=1 // pred_fallthru
      _
    %v47 = vld [vmem:[#allocation2] sm:$0xf]
    %v48 = vld [vmem:[#allocation2 + $0x4] sm:$0xf]
    %v49 = vld [vmem:[#allocation5] sm:$0xf]
    %v50 = vld [vmem:[#allocation5 + $0x4] sm:$0xf]
    %v51 = vld [vmem:[#allocation5 + $0x8] sm:$0xf]
    %v52 = vld [vmem:[#allocation5 + $0xc] sm:$0xf]
    %v53 = vld [vmem:[%s2] sm:$0x1]
    %v55 = vlaneseq
    %v56 = vshrl.u32 %v55, 7
    %v57 = vsub.s32 0, %v56
    %v58 = vrot.slane %v53, %v57
    %v62 = vunpack.c.l.b16 %v47
    %v63 = vunpack.c.l.b16 %v48
    %v64 = vpack.c.b16 %v63, %v62
    %v69 = vunpack.c.l.b16 %v49
    %v70 = vunpack.c.l.b16 %v50
    %v71 = vunpack.c.l.b16 %v51
    %v72 = vunpack.c.l.b16 %v52
    %v73 = vpack.c.b16 %v70, %v69
    %v74 = vpack.c.b16 %v72, %v71
    %vm77 = vcmask 261120
    %v79 = vsel %vm77, %v64, 0
    %81 = vmatprep.subr.bf16.mxu0 0
    %82 = vmatpush1.bf16.msra.mxu0 %v73
    %83 = vmatprep.subr.bf16.mxu0 0
    %84 = vmatpush1.bf16.msra.mxu0 %v74
    %85 = vmatprep.subr.bf16.mxu0 0
    %86 = vmatpush1.bf16.msra.mxu0 0
    %87 = vmatprep.subr.bf16.mxu0 0
    %88 = vmatpush1.bf16.msra.mxu0 0
    %89 = vmatprep.subr.bf16.mxu0 0
    %90 = vmatpush1.bf16.msra.mxu0 0
    %91 = vmatprep.subr.bf16.mxu0 0
    %92 = vmatpush1.bf16.msra.mxu0 0
    %93 = vmatprep.subr.bf16.mxu0 0
    %94 = vmatpush1.bf16.msra.mxu0 0
    %95 = vmatprep.subr.bf16.mxu0 0
    %96 = vmatpush1.bf16.msra.mxu0 0
    %97 = vmatprep.subr.bf16.mxu0 0
    %98 = vmatpush1.bf16.msra.mxu0 0
    %99 = vmatprep.subr.bf16.mxu0 0
    %100 = vmatpush1.bf16.msra.mxu0 0
    %101 = vmatprep.subr.bf16.mxu0 0
    %102 = vmatpush1.bf16.msra.mxu0 0
    %103 = vmatprep.subr.bf16.mxu0 0
    %104 = vmatpush1.bf16.msra.mxu0 0
    %105 = vmatprep.subr.bf16.mxu0 0
    %106 = vmatpush1.bf16.msra.mxu0 0
    %107 = vmatprep.subr.bf16.mxu0 0
    %108 = vmatpush1.bf16.msra.mxu0 0
    %109 = vmatprep.subr.bf16.mxu0 0
    %110 = vmatpush1.bf16.msra.mxu0 0
    %111 = vmatprep.subr.bf16.mxu0 0
    %112 = vmatpush1.bf16.msra.mxu0 0
    %113 = vmatprep.mubr.bf16.mxu0 0
    %114 = vmatmul.mubr.bf16.gmra.mrb[0].mxu0 %v79
    %v115 = vpop.f32.mrb[0].mxu0
    %v116 = vadd.f32 %v58, %v115
    %v117 = vpop.f32.mrb[0].mxu0
    %v118 = vpop.f32.mrb[0].mxu0
    %v119 = vadd.f32 %v58, %v118
    %v120 = vpop.f32.mrb[0].mxu0
    %121 = vdwg.mxu0
    %122 = vst [vmem:[#allocation7] sm:$0xff] %v116
    %123 = vst [vmem:[#allocation7 + $0x8] sm:$0xff] %v119
    %124 = vmax.xlane.f32.xlu0 %v116
    %v125 = vpop.xlane.xlu0 %124
    %126 = vmax.xlane.f32.xlu0 %v119
    %v127 = vpop.xlane.xlu0 %126
    %v128 = vsub.f32 %v116, %v125
    %v129 = vsub.f32 %v119, %v127
    %v130 = vmul.f32 %v128, 1.442695
    %v131 = vpow.pop %v130
    %v132 = vmul.f32 %v129, 1.442695
    %v133 = vpow.pop %v132
    %134 = vadd.xlane.f32.xlu0 %v131
    %v135 = vpop.xlane.xlu0 %134
    %136 = vadd.xlane.f32.xlu0 %v133
    %v137 = vpop.xlane.xlu0 %136
    %v138 = vrcp.pop %v135
    %v139 = vrcp.pop %v137
    %v140 = vmul.f32 %v131, %v138
    %v141 = vmul.f32 %v133, %v139
    %142 = vst [vmem:[#allocation8] sm:$0xff] %v140
    %143 = vst [vmem:[#allocation8 + $0x8] sm:$0xff] %v141
    // Predicated region
    $region22: #{tpu_custom_call.1} parent=1 // pred_check
      _
    $region23: #{tpu_custom_call.1} parent=1 // pred_check_branch
      %145 = sbr.rel (0) target = $region25
    $region24: #{tpu_custom_call.1} parent=1 // pred_region
      %s147 = ssub.s32 256, 256
      %148 = vsyncadd [#allocation4], %s147
      %s149 = sshll.u32 [#allocation7], 4
      %s150 = int_to_ptr.vmem [resolvable:$true] %s149
      %155 = dma.vmem_to_hbm [thread:$0]  %s150, 256, %s3, [#allocation4], 128, 128, 8
    $region25: #{tpu_custom_call.1} parent=1 // pred_fallthru
      _
    // Predicated region
    $region26: #{tpu_custom_call.1} parent=1 // pred_check
      _
    $region27: #{tpu_custom_call.1} parent=1 // pred_check_branch
      %157 = sbr.rel (0) target = $region29
    $region28: #{tpu_custom_call.1} parent=1 // pred_region
      %s159 = ssub.s32 256, 256
      %160 = vsyncadd [#allocation9], %s159
      %s161 = sshll.u32 [#allocation8], 4
      %s162 = int_to_ptr.vmem [resolvable:$true] %s161
      %167 = dma.vmem_to_hbm [thread:$0]  %s162, 256, %s4, [#allocation9], 128, 128, 8
    $region29: #{tpu_custom_call.1} parent=1 // pred_fallthru
      _
    // Predicated region
    $region30: #{tpu_custom_call.1} parent=1 // pred_check
      _
    $region31: #{tpu_custom_call.1} parent=1 // pred_check_branch
      %169 = sbr.rel (0) target = $region33
    $region32: #{tpu_custom_call.1} parent=1 // pred_region
      %170 = dma.done [#allocation4], 256
    $region33: #{tpu_custom_call.1} parent=1 // pred_fallthru
      _
    // Predicated region
    $region34: #{tpu_custom_call.1} parent=1 // pred_check
      _
    $region35: #{tpu_custom_call.1} parent=1 // pred_check_branch
      %172 = sbr.rel (0) target = $region37
    $region36: #{tpu_custom_call.1} parent=1 // pred_region
      %173 = dma.done [#allocation9], 256
    $region37: #{tpu_custom_call.1} parent=1 // pred_fallthru
      _
    %174 = vsyncpa [#allocation3], 1
    %175 = vsyncpa [#allocation6], 1
    %176 = vsyncpa [#allocation4], 1
    %177 = vsyncpa [#allocation9], 1

</llo_original>
